<compile_context>
chip_gen: v7x
topology: tpu7x:2x2x1
jax: 0.10.0
libtpu: 0.0.40
codegen_flags: <defaults>
</compile_context>

<pallas_src>
import jax
import jax.numpy as jnp
from jax.experimental import pallas as pl
from jax.experimental.pallas import tpu as pltpu

F_IN = 26      # fc1 in_features
H = 3          # fc1/fc2 hidden size
F_OUT = 1      # fc3 out_features

H_PAD = 8      # fc1 output rows padded to the sublane granule
N_CONST = 19   # b1(3) | w2 row-major(9) | b2(3) | w3(3) | b3(1)
TB_MAX = 4096  # rows per batch tile (x double-buffer ~4 MiB, fine on v5e/v6e/v7x)


def _mlp_kernel(x_ref, w1_ref, c_ref, o_ref):
    # x_ref : (TB, 26) VMEM  input rows
    # w1_ref: (8, 26)  VMEM  fc1 weight, rows 3..7 zero-padded
    # c_ref : (19,)    SMEM  [b1(3) | w2 row-major(9) | b2(3) | w3(3) | b3(1)]
    # o_ref : (1, TB)  VMEM  output, batch on the LANE axis (dense stores)
    x = x_ref[...]
    w1 = w1_ref[...]

    # fc1 (transposed): h[j, t] = sum_k w1[j, k] * x[t, k]   -> (8, TB)
    # Same "contract last dims" form as the flash-attention q@k^T dot.
    h = jax.lax.dot_general(
        w1, x,
        dimension_numbers=(((1,), (1,)), ((), ())),
        preferred_element_type=jnp.float32)

    c = lambda i: c_ref[i]                                   # SMEM f32 scalar

    # fc1 bias + ReLU on the three live rows only.
    r0 = jnp.maximum(h[0:1, :] + c(0), 0.0)                  # (1, TB)
    r1 = jnp.maximum(h[1:2, :] + c(1), 0.0)
    r2 = jnp.maximum(h[2:3, :] + c(2), 0.0)

    # fc2 + ReLU: 9 scalar*vector FMAs on the VPU (no MXU, no XLU reduce).
    h2_0 = jnp.maximum(c(3) * r0 + c(4) * r1 + c(5) * r2 + c(12), 0.0)
    h2_1 = jnp.maximum(c(6) * r0 + c(7) * r1 + c(8) * r2 + c(13), 0.0)
    h2_2 = jnp.maximum(c(9) * r0 + c(10) * r1 + c(11) * r2 + c(14), 0.0)

    # fc3: 3 more FMAs -> (1, TB) lane-dense result.
    y = c(15) * h2_0 + c(16) * h2_1 + c(17) * h2_2 + c(18)

    o_ref[...] = y.astype(o_ref.dtype)


def pack_params(params):
    """One-time repack of (w1,b1,w2,b2,w3,b3) into the kernel layout."""
    w1, b1, w2, b2, w3, b3 = params
    w1p = jnp.zeros((H_PAD, F_IN), jnp.float32).at[:H, :].set(w1.astype(jnp.float32))
    consts = jnp.concatenate([
        b1.reshape(-1), w2.reshape(-1), b2.reshape(-1),
        w3.reshape(-1), b3.reshape(-1),
    ]).astype(jnp.float32)                                    # (19,)
    return w1p, consts


def _pick_tile(B):
    """Batch tile size + tile count (static, shape-driven)."""
    if B <= TB_MAX:
        return B, 1                       # single tile; don't split tiny batches
    n = -(-B // TB_MAX)                   # cdiv
    if n % 2:
        n += 1                            # even tile count -> both v7x TCs busy
    tb = ((-(-B // n) + 127) // 128) * 128   # lane-aligned tile (out block rule)
    return tb, -(-B // tb)


@jax.jit
def eval_model_forward(x, packed_params):
    """x: (B, 26) -> (B, 1) f32, matching EvalModel.forward."""
    w1p, consts = packed_params
    B = x.shape[0]
    TB, n_tiles = _pick_tile(B)

    out = pl.pallas_call(
        _mlp_kernel,
        out_shape=jax.ShapeDtypeStruct((1, B), jnp.float32),   # batch on lanes
        grid=(n_tiles,),
        in_specs=[
            pl.BlockSpec((TB, F_IN), lambda i: (i, 0)),          # x tile
            pl.BlockSpec((H_PAD, F_IN), lambda i: (0, 0)),       # fc1 weight (resident)
            pl.BlockSpec(memory_space=pltpu.MemorySpace.SMEM),   # fc2/fc3 scalars
        ],
        out_specs=pl.BlockSpec((1, TB), lambda i: (0, i)),
        compiler_params=pltpu.CompilerParams(
            dimension_semantics=("parallel",),
            vmem_limit_bytes=48 * 1024 * 1024,   # <= v7x's 64 MiB physical VMEM
        ),
    )(x.astype(jnp.float32), w1p, consts)

    return out.reshape(B, F_OUT)   # (1, B) -> (B, 1): layout-identical reshape


def init_params(key):
    """Deterministic init mirroring nn.Linear default (U(-1/sqrt(fan_in), ...))."""
    ks = jax.random.split(key, 6)

    def lin(kw, kb, out_f, in_f):
        bound = 1.0 / jnp.sqrt(in_f)
        w = jax.random.uniform(kw, (out_f, in_f), jnp.float32, -bound, bound)
        b = jax.random.uniform(kb, (out_f,), jnp.float32, -bound, bound)
        return w, b

    w1, b1 = lin(ks[0], ks[1], H, F_IN)       # fc1: (3, 26), (3,)
    w2, b2 = lin(ks[2], ks[3], H, H)          # fc2: (3, 3), (3,)
    w3, b3 = lin(ks[4], ks[5], F_OUT, H)      # fc3: (1, 3), (1,)
    return (w1, b1, w2, b2, w3, b3)


def reference_forward(x, params):
    w1, b1, w2, b2, w3, b3 = params
    h = jnp.maximum(x @ w1.T + b1, 0.0)
    h = jnp.maximum(h @ w2.T + b2, 0.0)
    return h @ w3.T + b3


if __name__ == "__main__":
    key = jax.random.PRNGKey(0)
    k_x, k_p = jax.random.split(key)

    B = 64
    x = jax.random.normal(k_x, (B, F_IN), jnp.float32)
    params = init_params(k_p)
    packed = pack_params(params)             # hoisted out of the per-call path

    y = eval_model_forward(x, packed)
    jax.block_until_ready(y)

    y_ref = reference_forward(x, params)
    assert y.shape == (B, F_OUT), y.shape
    assert jnp.allclose(y, y_ref, atol=1e-5, rtol=1e-5), (y, y_ref)

    print("KERNEL_OK")
</pallas_src>

<mosaic_0001>
module attributes {stable_mosaic.version = 11 : i64} {
  func.func @_mlp_kernel(%arg0: i32, %arg1: memref<64x26xf32, #tpu.memory_space<vmem>>, %arg2: memref<8x26xf32, #tpu.memory_space<vmem>>, %arg3: memref<19xf32, #tpu.memory_space<smem>>, %arg4: memref<1x64xf32, #tpu.memory_space<vmem>>) attributes {dimension_semantics = [#tpu.dimension_semantics<parallel>], iteration_bounds = array<i64: 1>, scalar_prefetch = 0 : i64, scratch_operands = 0 : i64, tpu.core_type = #tpu.core_type<tc>, window_params = [{transform_indices = @transform_0, window_bounds = array<i64: 64, 26>}, {pipeline_mode = #tpu.pipeline_mode<synchronous>, transform_indices = @transform_1, window_bounds = array<i64: 8, 26>}, {transform_indices = @transform_2, window_bounds = array<i64: 19>}, {transform_indices = @transform_3, window_bounds = array<i64: 1, 64>}]} {
    %c0 = arith.constant 0 : index
    %c0_0 = arith.constant 0 : index
    %0 = vector.load %arg1[%c0, %c0_0] : memref<64x26xf32, #tpu.memory_space<vmem>>, vector<64x26xf32>
    %c0_1 = arith.constant 0 : index
    %c0_2 = arith.constant 0 : index
    %1 = vector.load %arg2[%c0_1, %c0_2] : memref<8x26xf32, #tpu.memory_space<vmem>>, vector<8x26xf32>
    %cst = arith.constant dense<0.000000e+00> : vector<8x64xf32>
    %2 = tpu.matmul %1, %0, %cst {dimension_numbers = #tpu.dot_dimension_numbers<[1], [1], [0], [0], [0, 0, 1, 0], [], []>} : vector<8x26xf32>, vector<64x26xf32>, vector<8x64xf32> -> vector<8x64xf32>
    %3 = vector.extract_strided_slice %2 {offsets = [0, 0], sizes = [1, 64], strides = [1, 1]} : vector<8x64xf32> to vector<1x64xf32>
    %c0_3 = arith.constant 0 : index
    %4 = memref.load %arg3[%c0_3] : memref<19xf32, #tpu.memory_space<smem>>
    %5 = vector.broadcast %4 : f32 to vector<1x64xf32>
    %6 = arith.addf %3, %5 : vector<1x64xf32>
    %cst_4 = arith.constant 0.000000e+00 : f32
    %7 = vector.broadcast %cst_4 : f32 to vector<1x64xf32>
    %8 = arith.maximumf %6, %7 : vector<1x64xf32>
    %9 = vector.extract_strided_slice %2 {offsets = [1, 0], sizes = [1, 64], strides = [1, 1]} : vector<8x64xf32> to vector<1x64xf32>
    %c1 = arith.constant 1 : index
    %10 = memref.load %arg3[%c1] : memref<19xf32, #tpu.memory_space<smem>>
    %11 = vector.broadcast %10 : f32 to vector<1x64xf32>
    %12 = arith.addf %9, %11 : vector<1x64xf32>
    %cst_5 = arith.constant 0.000000e+00 : f32
    %13 = vector.broadcast %cst_5 : f32 to vector<1x64xf32>
    %14 = arith.maximumf %12, %13 : vector<1x64xf32>
    %15 = vector.extract_strided_slice %2 {offsets = [2, 0], sizes = [1, 64], strides = [1, 1]} : vector<8x64xf32> to vector<1x64xf32>
    %c2 = arith.constant 2 : index
    %16 = memref.load %arg3[%c2] : memref<19xf32, #tpu.memory_space<smem>>
    %17 = vector.broadcast %16 : f32 to vector<1x64xf32>
    %18 = arith.addf %15, %17 : vector<1x64xf32>
    %cst_6 = arith.constant 0.000000e+00 : f32
    %19 = vector.broadcast %cst_6 : f32 to vector<1x64xf32>
    %20 = arith.maximumf %18, %19 : vector<1x64xf32>
    %c3 = arith.constant 3 : index
    %21 = memref.load %arg3[%c3] : memref<19xf32, #tpu.memory_space<smem>>
    %22 = vector.broadcast %21 : f32 to vector<1x64xf32>
    %23 = arith.mulf %22, %8 : vector<1x64xf32>
    %c4 = arith.constant 4 : index
    %24 = memref.load %arg3[%c4] : memref<19xf32, #tpu.memory_space<smem>>
    %25 = vector.broadcast %24 : f32 to vector<1x64xf32>
    %26 = arith.mulf %25, %14 : vector<1x64xf32>
    %27 = arith.addf %23, %26 : vector<1x64xf32>
    %c5 = arith.constant 5 : index
    %28 = memref.load %arg3[%c5] : memref<19xf32, #tpu.memory_space<smem>>
    %29 = vector.broadcast %28 : f32 to vector<1x64xf32>
    %30 = arith.mulf %29, %20 : vector<1x64xf32>
    %31 = arith.addf %27, %30 : vector<1x64xf32>
    %c12 = arith.constant 12 : index
    %32 = memref.load %arg3[%c12] : memref<19xf32, #tpu.memory_space<smem>>
    %33 = vector.broadcast %32 : f32 to vector<1x64xf32>
    %34 = arith.addf %31, %33 : vector<1x64xf32>
    %cst_7 = arith.constant 0.000000e+00 : f32
    %35 = vector.broadcast %cst_7 : f32 to vector<1x64xf32>
    %36 = arith.maximumf %34, %35 : vector<1x64xf32>
    %c6 = arith.constant 6 : index
    %37 = memref.load %arg3[%c6] : memref<19xf32, #tpu.memory_space<smem>>
    %38 = vector.broadcast %37 : f32 to vector<1x64xf32>
    %39 = arith.mulf %38, %8 : vector<1x64xf32>
    %c7 = arith.constant 7 : index
    %40 = memref.load %arg3[%c7] : memref<19xf32, #tpu.memory_space<smem>>
    %41 = vector.broadcast %40 : f32 to vector<1x64xf32>
    %42 = arith.mulf %41, %14 : vector<1x64xf32>
    %43 = arith.addf %39, %42 : vector<1x64xf32>
    %c8 = arith.constant 8 : index
    %44 = memref.load %arg3[%c8] : memref<19xf32, #tpu.memory_space<smem>>
    %45 = vector.broadcast %44 : f32 to vector<1x64xf32>
    %46 = arith.mulf %45, %20 : vector<1x64xf32>
    %47 = arith.addf %43, %46 : vector<1x64xf32>
    %c13 = arith.constant 13 : index
    %48 = memref.load %arg3[%c13] : memref<19xf32, #tpu.memory_space<smem>>
    %49 = vector.broadcast %48 : f32 to vector<1x64xf32>
    %50 = arith.addf %47, %49 : vector<1x64xf32>
    %cst_8 = arith.constant 0.000000e+00 : f32
    %51 = vector.broadcast %cst_8 : f32 to vector<1x64xf32>
    %52 = arith.maximumf %50, %51 : vector<1x64xf32>
    %c9 = arith.constant 9 : index
    %53 = memref.load %arg3[%c9] : memref<19xf32, #tpu.memory_space<smem>>
    %54 = vector.broadcast %53 : f32 to vector<1x64xf32>
    %55 = arith.mulf %54, %8 : vector<1x64xf32>
    %c10 = arith.constant 10 : index
    %56 = memref.load %arg3[%c10] : memref<19xf32, #tpu.memory_space<smem>>
    %57 = vector.broadcast %56 : f32 to vector<1x64xf32>
    %58 = arith.mulf %57, %14 : vector<1x64xf32>
    %59 = arith.addf %55, %58 : vector<1x64xf32>
    %c11 = arith.constant 11 : index
    %60 = memref.load %arg3[%c11] : memref<19xf32, #tpu.memory_space<smem>>
    %61 = vector.broadcast %60 : f32 to vector<1x64xf32>
    %62 = arith.mulf %61, %20 : vector<1x64xf32>
    %63 = arith.addf %59, %62 : vector<1x64xf32>
    %c14 = arith.constant 14 : index
    %64 = memref.load %arg3[%c14] : memref<19xf32, #tpu.memory_space<smem>>
    %65 = vector.broadcast %64 : f32 to vector<1x64xf32>
    %66 = arith.addf %63, %65 : vector<1x64xf32>
    %cst_9 = arith.constant 0.000000e+00 : f32
    %67 = vector.broadcast %cst_9 : f32 to vector<1x64xf32>
    %68 = arith.maximumf %66, %67 : vector<1x64xf32>
    %c15 = arith.constant 15 : index
    %69 = memref.load %arg3[%c15] : memref<19xf32, #tpu.memory_space<smem>>
    %70 = vector.broadcast %69 : f32 to vector<1x64xf32>
    %71 = arith.mulf %70, %36 : vector<1x64xf32>
    %c16 = arith.constant 16 : index
    %72 = memref.load %arg3[%c16] : memref<19xf32, #tpu.memory_space<smem>>
    %73 = vector.broadcast %72 : f32 to vector<1x64xf32>
    %74 = arith.mulf %73, %52 : vector<1x64xf32>
    %75 = arith.addf %71, %74 : vector<1x64xf32>
    %c17 = arith.constant 17 : index
    %76 = memref.load %arg3[%c17] : memref<19xf32, #tpu.memory_space<smem>>
    %77 = vector.broadcast %76 : f32 to vector<1x64xf32>
    %78 = arith.mulf %77, %68 : vector<1x64xf32>
    %79 = arith.addf %75, %78 : vector<1x64xf32>
    %c18 = arith.constant 18 : index
    %80 = memref.load %arg3[%c18] : memref<19xf32, #tpu.memory_space<smem>>
    %81 = vector.broadcast %80 : f32 to vector<1x64xf32>
    %82 = arith.addf %79, %81 : vector<1x64xf32>
    %c0_10 = arith.constant 0 : index
    %c0_11 = arith.constant 0 : index
    %83 = vector.load %arg4[%c0_10, %c0_11] : memref<1x64xf32, #tpu.memory_space<vmem>>, vector<1x64xf32>
    tpu.vector_store %arg4[%c0_10, %c0_11], %82 {strides = array<i32>} : memref<1x64xf32, #tpu.memory_space<vmem>>, vector<1x64xf32>,
    return
  }
  func.func @transform_0(%arg0: i32) -> (i32, i32) {
    %c0_i32 = arith.constant 0 : i32
    %c0_i32_0 = arith.constant 0 : i32
    return %arg0, %c0_i32 : i32, i32
  }
  func.func @transform_1(%arg0: i32) -> (i32, i32) {
    %c0_i32 = arith.constant 0 : i32
    %c0_i32_0 = arith.constant 0 : i32
    %c0_i32_1 = arith.constant 0 : i32
    return %c0_i32, %c0_i32_0 : i32, i32
  }
  func.func @transform_2(%arg0: i32) -> i32 {
    %c0_i32 = arith.constant 0 : i32
    %c0_i32_0 = arith.constant 0 : i32
    return %c0_i32 : i32
  }
  func.func @transform_3(%arg0: i32) -> (i32, i32) {
    %c0_i32 = arith.constant 0 : i32
    %c0_i32_0 = arith.constant 0 : i32
    return %c0_i32, %arg0 : i32, i32
  }
}

</mosaic_0001>

<llo_original>
// kernel: eval_model_forward.1
$region0: #{eval_model_forward.1}
  #allocation0 [shape = 'u32[]', space=smem, size = 0x4, offset = 0x4, fixed_abs, tag = 'smem constant byte address 0x4 - core index']
  #allocation1 [shape = 'u32[144,128]{1,0:T(1,128)}', space=vmem, size = 0x12000, scoped, tag = 'internal scratch']
  %s0 = inlined_call_operand.vmem [shape: f32[64,26], index: 0, kind: input, shape index: {}]
  %s1 = inlined_call_operand.vmem [shape: f32[8,26], index: 1, kind: input, shape index: {}]
  %s2 = inlined_call_operand.vmem [shape: f32[19], index: 2, kind: input, shape index: {}]
  %s3 = inlined_call_operand.hbm [shape: f32[1,64], index: 3, kind: output, shape index: {}]
  %s4 = sld [smem:[#allocation0]]
  $region26: #{eval_model_forward.1} parent=0
    _
  %s6 = ssub.s32 1, %s4
  %s7 = scalar_select 0, %s6, %s4
  $region1: #{eval_model_forward.1} parent=0
    #allocation2 [shape = 'u8[512]{0}', space=smem, size = 0x200, scoped, tag = 'input window, operand 2, single buffered']
    #allocation3 [shape = 's32[1]{0}', space=sflag, size = 0x4, scoped, tag = 'scoped memory for eval_model_forward.1']
    #allocation4 [shape = 's32[1]{0}', space=sflag, size = 0x4, scoped, tag = 'scoped memory for eval_model_forward.1']
    #allocation5 [shape = 'u8[512]{0}', space=vmem, size = 0x400, scoped, tag = 'output window, operand 0, single buffered']
    %8 = vsyncpa [#allocation4], 0
    %9 = vsyncpa [#allocation3], 0
    // Predicated region
    $region2: #{eval_model_forward.1} parent=1 // pred_check
      _
    $region3: #{eval_model_forward.1} parent=1 // pred_check_branch
      %11 = sbr.rel (0) target = $region5
    $region4: #{eval_model_forward.1} parent=1 // pred_region
      _
    $region5: #{eval_model_forward.1} parent=1 // pred_fallthru
      _
    // Predicated region
    $region6: #{eval_model_forward.1} parent=1 // pred_check
      _
    $region7: #{eval_model_forward.1} parent=1 // pred_check_branch
      %13 = sbr.rel (0) target = $region9
    $region8: #{eval_model_forward.1} parent=1 // pred_region
      _
    $region9: #{eval_model_forward.1} parent=1 // pred_fallthru
      _
    // Predicated region
    $region10: #{eval_model_forward.1} parent=1 // pred_check
      _
    $region11: #{eval_model_forward.1} parent=1 // pred_check_branch
      %15 = sbr.rel (0) target = $region13
    $region12: #{eval_model_forward.1} parent=1 // pred_region
      %s17 = ssub.s32 16, 16
      %18 = vsyncadd [#allocation4], %s17
      %s20 = sshll.u32 %s2, 4
      %s21 = int_to_ptr.vmem [resolvable:$true] %s20
      %23 = dma.vmem_to_smem %s21, 16, [#allocation2], [#allocation4]
    $region13: #{eval_model_forward.1} parent=1 // pred_fallthru
      _
    // Predicated region
    $region14: #{eval_model_forward.1} parent=1 // pred_check
      _
    $region15: #{eval_model_forward.1} parent=1 // pred_check_branch
      %25 = sbr.rel (0) target = $region17
    $region16: #{eval_model_forward.1} parent=1 // pred_region
      %26 = dma.done [#allocation4], 16
    $region17: #{eval_model_forward.1} parent=1 // pred_fallthru
      _
    %27 = sfence
    %v28 = vld [vmem:[%s0] sm:$0xff]
    %v29 = vld [vmem:[%s0 + $0x8] sm:$0xff]
    %v30 = vld [vmem:[%s0 + $0x10] sm:$0xff]
    %v31 = vld [vmem:[%s0 + $0x18] sm:$0xff]
    %v32 = vld [vmem:[%s0 + $0x20] sm:$0xff]
    %v33 = vld [vmem:[%s0 + $0x28] sm:$0xff]
    %v34 = vld [vmem:[%s0 + $0x30] sm:$0xff]
    %v35 = vld [vmem:[%s0 + $0x38] sm:$0xff]
    %v36 = vld [vmem:[%s1] sm:$0xff]
    %vm37 = vcmask 211968
    %v39 = vsel %vm37, %v36, 0
    %v42 = vsel %vm37, %v28, 0
    %v45 = vsel %vm37, %v29, 0
    %v48 = vsel %vm37, %v30, 0
    %v51 = vsel %vm37, %v31, 0
    %v54 = vsel %vm37, %v32, 0
    %v57 = vsel %vm37, %v33, 0
    %v60 = vsel %vm37, %v34, 0
    %v63 = vsel %vm37, %v35, 0
    %65 = vmatprep.subr.mxu0 0.0
    %66 = vmatpush1.xpose.msra.mxu0 %v42
    %67 = vmatprep.subr.mxu0 0.0
    %68 = vmatpush1.xpose.msra.mxu0 %v45
    %69 = vmatprep.subr.mxu0 0.0
    %70 = vmatpush1.xpose.msra.mxu0 %v48
    %71 = vmatprep.subr.mxu0 0.0
    %72 = vmatpush1.xpose.msra.mxu0 %v51
    %73 = vmatprep.subr.mxu0 0.0
    %74 = vmatpush1.xpose.msra.mxu0 %v54
    %75 = vmatprep.subr.mxu0 0.0
    %76 = vmatpush1.xpose.msra.mxu0 %v57
    %77 = vmatprep.subr.mxu0 0.0
    %78 = vmatpush1.xpose.msra.mxu0 %v60
    %79 = vmatprep.subr.mxu0 0.0
    %80 = vmatpush1.xpose.msra.mxu0 %v63
    %81 = vmatprep.subr.mxu0 0.0
    %82 = vmatpush1.xpose.msra.mxu0 0.0
    %83 = vmatprep.subr.mxu0 0.0
    %84 = vmatpush1.xpose.msra.mxu0 0.0
    %85 = vmatprep.subr.mxu0 0.0
    %86 = vmatpush1.xpose.msra.mxu0 0.0
    %87 = vmatprep.subr.mxu0 0.0
    %88 = vmatpush1.xpose.msra.mxu0 0.0
    %89 = vmatprep.subr.mxu0 0.0
    %90 = vmatpush1.xpose.msra.mxu0 0.0
    %91 = vmatprep.subr.mxu0 0.0
    %92 = vmatpush1.xpose.msra.mxu0 0.0
    %93 = vmatprep.subr.mxu0 0.0
    %94 = vmatpush1.xpose.msra.mxu0 0.0
    %95 = vmatprep.subr.mxu0 0.0
    %96 = vmatpush1.xpose.msra.mxu0 0.0
    %97 = vmatprep.subr.mxu0 0.0
    %98 = vmatpush1.xpose.msra.mxu0 0.0
    %99 = vmatprep.subr.mxu0 0.0
    %100 = vmatpush1.xpose.msra.mxu0 0.0
    %101 = vmatprep.subr.mxu0 0.0
    %102 = vmatpush1.xpose.msra.mxu0 0.0
    %103 = vmatprep.subr.mxu0 0.0
    %104 = vmatpush1.xpose.msra.mxu0 0.0
    %105 = vmatprep.subr.mxu0 0.0
    %106 = vmatpush1.xpose.msra.mxu0 0.0
    %107 = vmatprep.subr.mxu0 0.0
    %108 = vmatpush1.xpose.msra.mxu0 0.0
    %109 = vmatprep.subr.mxu0 0.0
    %110 = vmatpush1.xpose.msra.mxu0 0.0
    %111 = vmatprep.subr.mxu0 0.0
    %112 = vmatpush1.xpose.msra.mxu0 0.0
    %113 = vmatprep.subr.mxu0 0.0
    %114 = vmatpush1.xpose.msra.mxu0 0.0
    %115 = vmatprep.subr.mxu0 0.0
    %116 = vmatpush1.xpose.msra.mxu0 0.0
    %117 = vmatprep.subr.mxu0 0.0
    %118 = vmatpush1.xpose.msra.mxu0 0.0
    %119 = vmatprep.subr.mxu0 0.0
    %120 = vmatpush1.xpose.msra.mxu0 0.0
    %121 = vmatprep.subr.mxu0 0.0
    %122 = vmatpush1.xpose.msra.mxu0 0.0
    %123 = vmatprep.subr.mxu0 0.0
    %124 = vmatpush1.xpose.msra.mxu0 0.0
    %125 = vmatprep.subr.mxu0 0.0
    %126 = vmatpush1.xpose.msra.mxu0 0.0
    %127 = vmatprep.subr.mxu0 0.0
    %128 = vmatpush1.xpose.msra.mxu0 0.0
    %129 = vmatprep.mubr.f32.mxu0 0.0
    %130 = vmatmul.mubr.f32.gmra.mrb[0].mxu0 %v39
    %v131 = vpop.f32.mrb[0].mxu0
    %v132 = vadd.f32 0.0, %v131
    %v133 = vpop.f32.mrb[0].mxu0
    %134 = vdwg.mxu0
    %s135 = sld [smem:[#allocation2]]
    %v136 = vstv %s135
    %v137 = vadd.f32 %v132, %v136
    %v138 = vmax.f32 %v137, 0.0
    %s139 = sld [smem:[#allocation2 + $0x1]]
    %v140 = vstv %s139
    %v141 = vadd.f32 %v132, %v140
    %v142 = vmax.f32 %v141, 0.0
    %s143 = sld [smem:[#allocation2 + $0x2]]
    %v144 = vstv %s143
    %v145 = vadd.f32 %v132, %v144
    %v146 = vmax.f32 %v145, 0.0
    %s147 = sld [smem:[#allocation2 + $0x3]]
    %v148 = vstv %s147
    %v149 = vmul.f32 %v148, %v138
    %s150 = sld [smem:[#allocation2 + $0x4]]
    %v151 = vstv %s150
    %v152 = vmul.f32 %v151, %v142
    %v154 = vrot.slane %v152, 1
    %v156 = vadd.f32 %v149, %v154
    %s157 = sld [smem:[#allocation2 + $0x5]]
    %v158 = vstv %s157
    %v159 = vmul.f32 %v158, %v146
    %v161 = vrot.slane %v159, 2
    %v163 = vadd.f32 %v156, %v161
    %s164 = sld [smem:[#allocation2 + $0xc]]
    %v165 = vstv %s164
    %v166 = vadd.f32 %v163, %v165
    %v167 = vmax.f32 %v166, 0.0
    %s168 = sld [smem:[#allocation2 + $0x6]]
    %v169 = vstv %s168
    %v170 = vmul.f32 %v169, %v138
    %s171 = sld [smem:[#allocation2 + $0x7]]
    %v172 = vstv %s171
    %v173 = vmul.f32 %v172, %v142
    %v175 = vrot.slane %v173, 1
    %v177 = vadd.f32 %v170, %v175
    %s178 = sld [smem:[#allocation2 + $0x8]]
    %v179 = vstv %s178
    %v180 = vmul.f32 %v179, %v146
    %v182 = vrot.slane %v180, 2
    %v184 = vadd.f32 %v177, %v182
    %s185 = sld [smem:[#allocation2 + $0xd]]
    %v186 = vstv %s185
    %v187 = vadd.f32 %v184, %v186
    %v188 = vmax.f32 %v187, 0.0
    %s189 = sld [smem:[#allocation2 + $0x9]]
    %v190 = vstv %s189
    %v191 = vmul.f32 %v190, %v138
    %s192 = sld [smem:[#allocation2 + $0xa]]
    %v193 = vstv %s192
    %v194 = vmul.f32 %v193, %v142
    %v196 = vrot.slane %v194, 1
    %v198 = vadd.f32 %v191, %v196
    %s199 = sld [smem:[#allocation2 + $0xb]]
    %v200 = vstv %s199
    %v201 = vmul.f32 %v200, %v146
    %v203 = vrot.slane %v201, 2
    %v205 = vadd.f32 %v198, %v203
    %s206 = sld [smem:[#allocation2 + $0xe]]
    %v207 = vstv %s206
    %v208 = vadd.f32 %v205, %v207
    %v209 = vmax.f32 %v208, 0.0
    %s210 = sld [smem:[#allocation2 + $0xf]]
    %v211 = vstv %s210
    %v212 = vmul.f32 %v211, %v167
    %s213 = sld [smem:[#allocation2 + $0x10]]
    %v214 = vstv %s213
    %v215 = vmul.f32 %v214, %v188
    %v216 = vadd.f32 %v212, %v215
    %s217 = sld [smem:[#allocation2 + $0x11]]
    %v218 = vstv %s217
    %v219 = vmul.f32 %v218, %v209
    %v220 = vadd.f32 %v216, %v219
    %s221 = sld [smem:[#allocation2 + $0x12]]
    %v222 = vstv %s221
    %v223 = vadd.f32 %v220, %v222
    %vm224 = vcmask 516096
    %225 = vst.msk [vmem:[#allocation5] sm:$0x1] %vm224, %v223
    // Predicated region
    $region18: #{eval_model_forward.1} parent=1 // pred_check
      _
    $region19: #{eval_model_forward.1} parent=1 // pred_check_branch
      %227 = sbr.rel (0) target = $region21
    $region20: #{eval_model_forward.1} parent=1 // pred_region
      %s229 = ssub.s32 16, 16
      %230 = vsyncadd [#allocation3], %s229
      %s232 = sshll.u32 [#allocation5], 4
      %s233 = int_to_ptr.vmem [resolvable:$true] %s232
      %235 = dma.vmem_to_hbm [thread:$0]  %s233, 16, %s3, [#allocation3]
    $region21: #{eval_model_forward.1} parent=1 // pred_fallthru
      _
    // Predicated region
    $region22: #{eval_model_forward.1} parent=1 // pred_check
      _
    $region23: #{eval_model_forward.1} parent=1 // pred_check_branch
      %237 = sbr.rel (0) target = $region25
    $region24: #{eval_model_forward.1} parent=1 // pred_region
      %238 = dma.done [#allocation3], 16
    $region25: #{eval_model_forward.1} parent=1 // pred_fallthru
      _
    %239 = vsyncpa [#allocation3], 1
    %240 = vsyncpa [#allocation4], 1

</llo_original>
